<compile_context>
chip_gen: v7x
topology: tpu7x:2x2x1
jax: 0.10.0
libtpu: 0.0.40
codegen_flags: <defaults>
</compile_context>

<pallas_src>
import functools

import jax
import jax.numpy as jnp
from jax.experimental import pallas as pl
from jax.experimental.pallas import tpu as pltpu


def _round_up(x, m):
    return (x + m - 1) // m * m


# --------------------------------------------------------------------------- #
# Kernels
# --------------------------------------------------------------------------- #
def rgcn_ax_then_w_kernel(a_ref, x_ref, w_ref, b_ref, o_ref, ax_ref, *, apply_relu):
    """(A_r @ X) @ W_r accumulated over (relation, src-tile) into resident o_ref."""
    r = pl.program_id(1)
    s = pl.program_id(2)
    last_r = pl.num_programs(1) - 1
    last_s = pl.num_programs(2) - 1

    @pl.when(jnp.logical_and(r == 0, s == 0))
    def _():
        o_ref[...] = jnp.zeros_like(o_ref)

    @pl.when(s == 0)
    def _():
        ax_ref[...] = jnp.zeros_like(ax_ref)

    # Stage 1: accumulate A_r[dst_tile, src_tile] @ X[src_tile] over src tiles.
    ax_ref[...] += jnp.dot(a_ref[...], x_ref[...],
                           preferred_element_type=jnp.float32)

    # Stage 2: src reduction complete -> push through W_r into the output acc.
    @pl.when(s == last_s)
    def _():
        o_ref[...] += jnp.dot(ax_ref[...].astype(w_ref.dtype), w_ref[...],
                              preferred_element_type=jnp.float32)

    @pl.when(jnp.logical_and(r == last_r, s == last_s))
    def _():
        res = o_ref[...] + b_ref[...]
        if apply_relu:
            res = jnp.maximum(res, 0.0)
        o_ref[...] = res


def rgcn_a_xw_kernel(a_ref, xw_ref, b_ref, o_ref, *, apply_relu):
    """A_r @ (X @ W_r) with XW precomputed; accumulate over (relation, src-tile)."""
    r = pl.program_id(1)
    s = pl.program_id(2)
    last_r = pl.num_programs(1) - 1
    last_s = pl.num_programs(2) - 1

    @pl.when(jnp.logical_and(r == 0, s == 0))
    def _():
        o_ref[...] = jnp.zeros_like(o_ref)

    o_ref[...] += jnp.dot(a_ref[...], xw_ref[...],
                          preferred_element_type=jnp.float32)

    @pl.when(jnp.logical_and(r == last_r, s == last_s))
    def _():
        res = o_ref[...] + b_ref[...]
        if apply_relu:
            res = jnp.maximum(res, 0.0)
        o_ref[...] = res


# --------------------------------------------------------------------------- #
# Layer wrapper
# --------------------------------------------------------------------------- #
def rgcn_layer(a_norm, x, w, b, *, apply_relu, compute_dtype=jnp.bfloat16,
               tm_max=512, tk_max=512):
    """a_norm: (R, N_dst, N_src), x: (N_src, F_in), w: (R, F_in, F_out), b: (R, F_out)."""
    num_rel, n_dst, n_src = a_norm.shape
    f_in = x.shape[1]
    f_out = w.shape[2]

    # Lane-dense padding of feature dims; tile + pad the node dims.
    f_in_p = _round_up(f_in, 128)
    f_out_p = _round_up(f_out, 128)
    tm = min(tm_max, _round_up(n_dst, 8))       # dst tile (sublane-aligned)
    tk = min(tk_max, _round_up(n_src, 128))     # src tile (lane-aligned)
    n_dst_p = _round_up(n_dst, tm)
    n_src_p = _round_up(n_src, tk)

    # Contraction order: go through the smaller (padded) feature dim first.
    ax_first = (f_in_p, f_in) <= (f_out_p, f_out)

    a_p = jnp.pad(a_norm, ((0, 0), (0, n_dst_p - n_dst), (0, n_src_p - n_src))
                  ).astype(compute_dtype)
    x_p = jnp.pad(x, ((0, n_src_p - n_src), (0, f_in_p - f_in))
                  ).astype(compute_dtype)
    w_p = jnp.pad(w, ((0, 0), (0, f_in_p - f_in), (0, f_out_p - f_out))
                  ).astype(compute_dtype)
    b_total = jnp.sum(b, axis=0)                # aggregate='sum' => biases add
    b_p = jnp.pad(b_total, (0, f_out_p - f_out)).reshape(1, f_out_p
                  ).astype(jnp.float32)

    grid = (n_dst_p // tm, num_rel, n_src_p // tk)

    a_spec = pl.BlockSpec((pl.Squeezed(), tm, tk), lambda d, r, s: (r, d, s))
    b_spec = pl.BlockSpec((1, f_out_p), lambda d, r, s: (0, 0))
    out_spec = pl.BlockSpec((tm, f_out_p), lambda d, r, s: (d, 0))
    out_shape = jax.ShapeDtypeStruct((n_dst_p, f_out_p), jnp.float32)

    compiler_params = pltpu.CompilerParams(
        dimension_semantics=("parallel", "arbitrary", "arbitrary"),
        vmem_limit_bytes=48 * 1024 * 1024,
    )

    if ax_first:
        kernel = functools.partial(rgcn_ax_then_w_kernel, apply_relu=apply_relu)
        out_p = pl.pallas_call(
            kernel,
            out_shape=out_shape,
            grid_spec=pltpu.PrefetchScalarGridSpec(
                num_scalar_prefetch=0,
                grid=grid,
                in_specs=[
                    a_spec,
                    pl.BlockSpec((tk, f_in_p), lambda d, r, s: (s, 0)),
                    pl.BlockSpec((pl.Squeezed(), f_in_p, f_out_p),
                                 lambda d, r, s: (r, 0, 0)),
                    b_spec,
                ],
                out_specs=out_spec,
                scratch_shapes=[pltpu.VMEM((tm, f_in_p), jnp.float32)],
            ),
            compiler_params=compiler_params,
        )(a_p, x_p, w_p, b_p)
    else:
        # Hoist X @ W_r out of the kernel so it is not recomputed per dst tile.
        xw_p = jnp.einsum("sf,rfo->rso", x_p, w_p,
                          preferred_element_type=jnp.float32).astype(compute_dtype)
        kernel = functools.partial(rgcn_a_xw_kernel, apply_relu=apply_relu)
        out_p = pl.pallas_call(
            kernel,
            out_shape=out_shape,
            grid_spec=pltpu.PrefetchScalarGridSpec(
                num_scalar_prefetch=0,
                grid=grid,
                in_specs=[
                    a_spec,
                    pl.BlockSpec((pl.Squeezed(), tk, f_out_p),
                                 lambda d, r, s: (r, s, 0)),
                    b_spec,
                ],
                out_specs=out_spec,
            ),
            compiler_params=compiler_params,
        )(a_p, xw_p, b_p)

    return out_p[:n_dst, :f_out]


def normalize_adj(a):
    """GraphConv norm='both': A_hat = D_dst^{-1/2} A D_src^{-1/2}, degs clamped to 1."""
    deg_src = jnp.sum(a, axis=1)  # (R, N_src) out-degree of source nodes
    deg_dst = jnp.sum(a, axis=2)  # (R, N_dst) in-degree of destination nodes
    inv_sqrt_src = jnp.clip(deg_src, 1.0, None) ** -0.5
    inv_sqrt_dst = jnp.clip(deg_dst, 1.0, None) ** -0.5
    return a * inv_sqrt_dst[:, :, None] * inv_sqrt_src[:, None, :]


def naive_rgcn_forward(adjs, x, params, compute_dtype=jnp.bfloat16):
    """Two-layer RGCN: conv1 -> ReLU -> conv2 (aggregate='sum' per layer)."""
    h = rgcn_layer(adjs[0], x, params["w1"], params["b1"],
                   apply_relu=True, compute_dtype=compute_dtype)
    h = rgcn_layer(adjs[1], h, params["w2"], params["b2"],
                   apply_relu=False, compute_dtype=compute_dtype)
    return {"node": h}


# --------------------------------------------------------------------------- #
# References
# --------------------------------------------------------------------------- #
def naive_rgcn_reference_f32(adjs, x, params):
    """Pure-f32 JAX reference (exact math)."""
    h = jnp.einsum("rij,jf,rfo->io", adjs[0], x, params["w1"]) + params["b1"].sum(0)
    h = jnp.maximum(h, 0.0)
    h = jnp.einsum("rij,jf,rfo->io", adjs[1], h, params["w2"]) + params["b2"].sum(0)
    return {"node": h}


def naive_rgcn_reference_quant(adjs, x, params, compute_dtype=jnp.bfloat16):
    """Reference mimicking the kernel's bf16 casts and contraction order."""
    def q(v):
        return v.astype(compute_dtype).astype(jnp.float32)

    def layer(a, h, w, b, apply_relu):
        f_in, f_out = w.shape[1], w.shape[2]
        f_in_p, f_out_p = _round_up(f_in, 128), _round_up(f_out, 128)
        ax_first = (f_in_p, f_in) <= (f_out_p, f_out)
        out = jnp.zeros((a.shape[1], f_out), jnp.float32)
        for r in range(a.shape[0]):
            if ax_first:
                p = q(a[r]) @ q(h)
                out = out + q(p) @ q(w[r])
            else:
                p = q(h) @ q(w[r])
                out = out + q(a[r]) @ q(p)
        out = out + jnp.sum(b, axis=0)
        return jnp.maximum(out, 0.0) if apply_relu else out

    h = layer(adjs[0], x, params["w1"], params["b1"], True)
    h = layer(adjs[1], h, params["w2"], params["b2"], False)
    return {"node": h}


if __name__ == "__main__":
    # Small deterministic setup: 16 nodes, 3 relations, in=8, hid=32, out=16.
    N, R = 16, 3
    in_feats, hid_feats, out_feats = 8, 32, 16

    key = jax.random.PRNGKey(0)
    k_adj0, k_adj1, k_x, k_w1, k_b1, k_w2, k_b2 = jax.random.split(key, 7)

    # Two message-flow graphs (mfgs[0], mfgs[1]) as dense binary adjacency.
    adj0 = (jax.random.uniform(k_adj0, (R, N, N)) < 0.3).astype(jnp.float32)
    adj1 = (jax.random.uniform(k_adj1, (R, N, N)) < 0.3).astype(jnp.float32)
    adjs = (normalize_adj(adj0), normalize_adj(adj1))

    x = jax.random.normal(k_x, (N, in_feats), dtype=jnp.float32)

    # Per-relation GraphConv parameters (deterministic synthetic init).
    params = {
        "w1": jax.random.normal(k_w1, (R, in_feats, hid_feats), jnp.float32)
        * (1.0 / jnp.sqrt(in_feats)),
        "b1": 0.1 * jax.random.normal(k_b1, (R, hid_feats), jnp.float32),
        "w2": jax.random.normal(k_w2, (R, hid_feats, out_feats), jnp.float32)
        * (1.0 / jnp.sqrt(hid_feats)),
        "b2": 0.1 * jax.random.normal(k_b2, (R, out_feats), jnp.float32),
    }

    out = naive_rgcn_forward(adjs, x, params)
    out = jax.tree_util.tree_map(jax.block_until_ready, out)
    assert out["node"].shape == (N, out_feats)

    # Tight check against a reference that applies the same bf16 rounding.
    ref_q = naive_rgcn_reference_quant(adjs, x, params)
    assert jnp.allclose(out["node"], ref_q["node"], atol=2e-2, rtol=2e-2)

    # Loose check against exact f32 math (bf16 MXU inputs => relaxed tolerance).
    ref = naive_rgcn_reference_f32(adjs, x, params)
    assert jnp.allclose(out["node"], ref["node"], atol=2e-1, rtol=1e-1)

    print("KERNEL_OK")
</pallas_src>

<mosaic_0001>
module attributes {stable_mosaic.version = 11 : i64} {
  func.func @rgcn_ax_then_w_kernel(%arg0: i32, %arg1: i32, %arg2: i32, %arg3: memref<1x16x128xbf16, #tpu.memory_space<vmem>>, %arg4: memref<128x128xbf16, #tpu.memory_space<vmem>>, %arg5: memref<1x128x128xbf16, #tpu.memory_space<vmem>>, %arg6: memref<1x128xf32, #tpu.memory_space<vmem>>, %arg7: memref<16x128xf32, #tpu.memory_space<vmem>>, %arg8: memref<16x128xf32, #tpu.memory_space<vmem>>) attributes {dimension_semantics = [#tpu.dimension_semantics<parallel>, #tpu.dimension_semantics<arbitrary>, #tpu.dimension_semantics<arbitrary>], iteration_bounds = array<i64: 1, 3, 1>, scalar_prefetch = 0 : i64, scratch_operands = 1 : i64, tpu.core_type = #tpu.core_type<tc>, window_params = [{transform_indices = @transform_0, window_bounds = array<i64: 1, 16, 128>}, {transform_indices = @transform_1, window_bounds = array<i64: 128, 128>}, {transform_indices = @transform_2, window_bounds = array<i64: 1, 128, 128>}, {pipeline_mode = #tpu.pipeline_mode<synchronous>, transform_indices = @transform_3, window_bounds = array<i64: 1, 128>}, {transform_indices = @transform_4, window_bounds = array<i64: 16, 128>}]} {
    %c0_i32 = arith.constant 0 : i32
    %0 = arith.cmpi eq, %arg1, %c0_i32 : i32
    %c0_i32_0 = arith.constant 0 : i32
    %1 = arith.cmpi eq, %arg2, %c0_i32_0 : i32
    %2 = arith.andi %0, %1 : i1
    %3 = arith.extui %2 : i1 to i32
    %c0_i32_1 = arith.constant 0 : i32
    %4 = arith.cmpi ne, %3, %c0_i32_1 : i32
    scf.if %4 {
      %cst_16 = arith.constant 0.000000e+00 : f32
      %23 = vector.broadcast %cst_16 : f32 to vector<16x128xf32>
      %c0_17 = arith.constant 0 : index
      %c0_18 = arith.constant 0 : index
      %24 = vector.load %arg7[%c0_17, %c0_18] : memref<16x128xf32, #tpu.memory_space<vmem>>, vector<16x128xf32>
      tpu.vector_store %arg7[%c0_17, %c0_18], %23 {strides = array<i32>} : memref<16x128xf32, #tpu.memory_space<vmem>>, vector<16x128xf32>,
    } else {
    }
    %c0_i32_2 = arith.constant 0 : i32
    %5 = arith.cmpi eq, %arg2, %c0_i32_2 : i32
    %6 = arith.extui %5 : i1 to i32
    %c0_i32_3 = arith.constant 0 : i32
    %7 = arith.cmpi ne, %6, %c0_i32_3 : i32
    scf.if %7 {
      %cst_16 = arith.constant 0.000000e+00 : f32
      %23 = vector.broadcast %cst_16 : f32 to vector<16x128xf32>
      %c0_17 = arith.constant 0 : index
      %c0_18 = arith.constant 0 : index
      %24 = vector.load %arg8[%c0_17, %c0_18] : memref<16x128xf32, #tpu.memory_space<vmem>>, vector<16x128xf32>
      tpu.vector_store %arg8[%c0_17, %c0_18], %23 {strides = array<i32>} : memref<16x128xf32, #tpu.memory_space<vmem>>, vector<16x128xf32>,
    } else {
    }
    %c0 = arith.constant 0 : index
    %c0_4 = arith.constant 0 : index
    %8 = vector.load %arg8[%c0, %c0_4] : memref<16x128xf32, #tpu.memory_space<vmem>>, vector<16x128xf32>
    %c0_5 = arith.constant 0 : index
    %c0_6 = arith.constant 0 : index
    %c0_7 = arith.constant 0 : index
    %9 = vector.load %arg3[%c0_5, %c0_6, %c0_7] : memref<1x16x128xbf16, #tpu.memory_space<vmem>>, vector<1x16x128xbf16>
    %10 = vector.shape_cast %9 : vector<1x16x128xbf16> to vector<16x128xbf16>
    %c0_8 = arith.constant 0 : index
    %c0_9 = arith.constant 0 : index
    %11 = vector.load %arg4[%c0_8, %c0_9] : memref<128x128xbf16, #tpu.memory_space<vmem>>, vector<128x128xbf16>
    %cst = arith.constant dense<0.000000e+00> : vector<16x128xf32>
    %12 = tpu.matmul %10, %11, %cst {dimension_numbers = #tpu.dot_dimension_numbers<[1], [0], [0], [1], [0, 0, 1, 1], [], []>} : vector<16x128xbf16>, vector<128x128xbf16>, vector<16x128xf32> -> vector<16x128xf32>
    %13 = arith.addf %8, %12 : vector<16x128xf32>
    %c0_10 = arith.constant 0 : index
    %c0_11 = arith.constant 0 : index
    %14 = vector.load %arg8[%c0_10, %c0_11] : memref<16x128xf32, #tpu.memory_space<vmem>>, vector<16x128xf32>
    tpu.vector_store %arg8[%c0_10, %c0_11], %13 {strides = array<i32>} : memref<16x128xf32, #tpu.memory_space<vmem>>, vector<16x128xf32>,
    %c0_i32_12 = arith.constant 0 : i32
    %15 = arith.cmpi eq, %arg2, %c0_i32_12 : i32
    %16 = arith.extui %15 : i1 to i32
    %c0_i32_13 = arith.constant 0 : i32
    %17 = arith.cmpi ne, %16, %c0_i32_13 : i32
    scf.if %17 {
      %c0_16 = arith.constant 0 : index
      %c0_17 = arith.constant 0 : index
      %23 = vector.load %arg7[%c0_16, %c0_17] : memref<16x128xf32, #tpu.memory_space<vmem>>, vector<16x128xf32>
      %c0_18 = arith.constant 0 : index
      %c0_19 = arith.constant 0 : index
      %24 = vector.load %arg8[%c0_18, %c0_19] : memref<16x128xf32, #tpu.memory_space<vmem>>, vector<16x128xf32>
      %25 = arith.truncf %24 : vector<16x128xf32> to vector<16x128xbf16>
      %c0_20 = arith.constant 0 : index
      %c0_21 = arith.constant 0 : index
      %c0_22 = arith.constant 0 : index
      %26 = vector.load %arg5[%c0_20, %c0_21, %c0_22] : memref<1x128x128xbf16, #tpu.memory_space<vmem>>, vector<1x128x128xbf16>
      %27 = vector.shape_cast %26 : vector<1x128x128xbf16> to vector<128x128xbf16>
      %cst_23 = arith.constant dense<0.000000e+00> : vector<16x128xf32>
      %28 = tpu.matmul %25, %27, %cst_23 {dimension_numbers = #tpu.dot_dimension_numbers<[1], [0], [0], [1], [0, 0, 1, 1], [], []>} : vector<16x128xbf16>, vector<128x128xbf16>, vector<16x128xf32> -> vector<16x128xf32>
      %29 = arith.addf %23, %28 : vector<16x128xf32>
      %c0_24 = arith.constant 0 : index
      %c0_25 = arith.constant 0 : index
      %30 = vector.load %arg7[%c0_24, %c0_25] : memref<16x128xf32, #tpu.memory_space<vmem>>, vector<16x128xf32>
      tpu.vector_store %arg7[%c0_24, %c0_25], %29 {strides = array<i32>} : memref<16x128xf32, #tpu.memory_space<vmem>>, vector<16x128xf32>,
    } else {
    }
    %c2_i32 = arith.constant 2 : i32
    %18 = arith.cmpi eq, %arg1, %c2_i32 : i32
    %c0_i32_14 = arith.constant 0 : i32
    %19 = arith.cmpi eq, %arg2, %c0_i32_14 : i32
    %20 = arith.andi %18, %19 : i1
    %21 = arith.extui %20 : i1 to i32
    %c0_i32_15 = arith.constant 0 : i32
    %22 = arith.cmpi ne, %21, %c0_i32_15 : i32
    scf.if %22 {
      %c0_16 = arith.constant 0 : index
      %c0_17 = arith.constant 0 : index
      %23 = vector.load %arg7[%c0_16, %c0_17] : memref<16x128xf32, #tpu.memory_space<vmem>>, vector<16x128xf32>
      %c0_18 = arith.constant 0 : index
      %c0_19 = arith.constant 0 : index
      %24 = vector.load %arg6[%c0_18, %c0_19] : memref<1x128xf32, #tpu.memory_space<vmem>>, vector<1x128xf32>
      %25 = vector.broadcast %24 : vector<1x128xf32> to vector<16x128xf32>
      %26 = arith.addf %23, %25 : vector<16x128xf32>
      %cst_20 = arith.constant 0.000000e+00 : f32
      %27 = vector.broadcast %cst_20 : f32 to vector<16x128xf32>
      %28 = arith.maximumf %26, %27 : vector<16x128xf32>
      %c0_21 = arith.constant 0 : index
      %c0_22 = arith.constant 0 : index
      %29 = vector.load %arg7[%c0_21, %c0_22] : memref<16x128xf32, #tpu.memory_space<vmem>>, vector<16x128xf32>
      tpu.vector_store %arg7[%c0_21, %c0_22], %28 {strides = array<i32>} : memref<16x128xf32, #tpu.memory_space<vmem>>, vector<16x128xf32>,
    } else {
    }
    return
  }
  func.func @transform_0(%arg0: i32, %arg1: i32, %arg2: i32) -> (i32, i32, i32) {
    %c0_i32 = arith.constant 0 : i32
    return %arg1, %arg0, %arg2 : i32, i32, i32
  }
  func.func @transform_1(%arg0: i32, %arg1: i32, %arg2: i32) -> (i32, i32) {
    %c0_i32 = arith.constant 0 : i32
    %c0_i32_0 = arith.constant 0 : i32
    return %arg2, %c0_i32 : i32, i32
  }
  func.func @transform_2(%arg0: i32, %arg1: i32, %arg2: i32) -> (i32, i32, i32) {
    %c0_i32 = arith.constant 0 : i32
    %c0_i32_0 = arith.constant 0 : i32
    %c0_i32_1 = arith.constant 0 : i32
    return %arg1, %c0_i32, %c0_i32_0 : i32, i32, i32
  }
  func.func @transform_3(%arg0: i32, %arg1: i32, %arg2: i32) -> (i32, i32) {
    %c0_i32 = arith.constant 0 : i32
    %c0_i32_0 = arith.constant 0 : i32
    %c0_i32_1 = arith.constant 0 : i32
    return %c0_i32, %c0_i32_0 : i32, i32
  }
  func.func @transform_4(%arg0: i32, %arg1: i32, %arg2: i32) -> (i32, i32) {
    %c0_i32 = arith.constant 0 : i32
    %c0_i32_0 = arith.constant 0 : i32
    return %arg0, %c0_i32 : i32, i32
  }
}

</mosaic_0001>

<llo_original>
// kernel: tpu_custom_call.1
$region0: #{tpu_custom_call.1}
  #allocation0 [shape = 'u32[]', space=smem, size = 0x4, offset = 0x4, fixed_abs, tag = 'smem constant byte address 0x4 - core index']
  #allocation1 [shape = 'u32[144,128]{1,0:T(1,128)}', space=vmem, size = 0x12000, scoped, tag = 'internal scratch']
  #allocation2 [shape = 'f32[16,128]{1,0:T(8,128)}', space=vmem, size = 0x2000, scoped, tag = 'scratch operand']
  %s0 = inlined_call_operand.hbm [shape: bf16[3,16,128], index: 0, kind: input, shape index: {}]
  %s1 = inlined_call_operand.hbm [shape: bf16[128,128], index: 1, kind: input, shape index: {}]
  %s2 = inlined_call_operand.hbm [shape: bf16[3,128,128], index: 2, kind: input, shape index: {}]
  %s3 = inlined_call_operand.vmem [shape: f32[1,128], index: 3, kind: input, shape index: {}]
  %s4 = inlined_call_operand.hbm [shape: f32[16,128], index: 4, kind: output, shape index: {}]
  %s5 = sld [smem:[#allocation0]]
  $region77: #{tpu_custom_call.1} parent=0
    _
  %s7 = ssub.s32 1, %s5
  %s8 = scalar_select 0, %s7, %s5
  $region1: #{tpu_custom_call.1} parent=0
    #allocation3 [shape = 'u8[8192]{0}', space=vmem, size = 0x2000, scoped, tag = 'input window, operand 0']
    #allocation4 [shape = 's32[2]{0}', space=sflag, size = 0x8, scoped, tag = 'scoped memory for tpu_custom_call.1']
    #allocation5 [shape = 's32[2]{0}', space=sflag, size = 0x8, scoped, tag = 'scoped memory for tpu_custom_call.1']
    #allocation6 [shape = 'u8[32768]{0}', space=vmem, size = 0x8000, scoped, tag = 'input window, operand 1, single buffered']
    #allocation7 [shape = 's32[1]{0}', space=sflag, size = 0x4, scoped, tag = 'scoped memory for tpu_custom_call.1']
    #allocation8 [shape = 'u8[65536]{0}', space=vmem, size = 0x10000, scoped, tag = 'input window, operand 2']
    #allocation9 [shape = 'u8[8192]{0}', space=vmem, size = 0x2000, scoped, tag = 'output window, operand 0, single buffered']
    %9 = vsyncpa [#allocation4], 0
    %s10 = scalar_lea.sflag [#allocation4], 1
    %11 = vsyncpa %s10, 0
    %12 = vsyncpa [#allocation7], 0
    %13 = vsyncpa [#allocation5], 0
    loop: start=0, step=1, limit=5
    $region2: #{tpu_custom_call.1} parent=1 // loop_pre_header
      _
    $region3: #{tpu_custom_call.1} parent=1 // loop_header
      %s15 = sphi 0, %s19
      %p16 = scmp.ge.s32.totalorder %s15, 5
      %s22 = sphi 0, %s41
      %s23 = sphi 0, %s37
      %s24 = sphi 0, %s33
      %s25 = sphi 0, %s22
      %s26 = sphi 0, %s23
      %s27 = sphi 0, %s24
      %s28 = sphi 0, %s25
      %s29 = sphi 0, %s26
      %s30 = sphi 0, %s27
      %s48 = sphi 0, %s50
      %s51 = sphi 0, %s48
      %s52 = sphi 0, %s51
      %s68 = sphi 0, %s52
      %s74 = sphi 0, %s76
      %s77 = sphi 0, %s74
      %s78 = sphi 0, %s77
      %s94 = sphi 0, %s78
      %s100 = sphi 0, %s102
      %s103 = sphi 0, %s100
      %s104 = sphi 0, %s103
      %s120 = sphi 0, %s104
      %s124 = sphi 0, %s124
      %s126 = sphi 0, %s124
      %s127 = sphi 0, %s126
      %s141 = sphi 0, %s127
      %s147 = sphi 0, %s149
      %s150 = sphi 0, %s147
      %s151 = sphi 0, %s150
      %s167 = sphi 0, %s151
    $region4: #{tpu_custom_call.1} parent=1 // loop_header_branch
      %18 = sbr.rel (%p16) target = $region8
    $region5: #{tpu_custom_call.1} parent=1 // loop_body
      %s20 = ssub.s32 %s15, 1
      %s21 = ssub.s32 %s15, 2
      %s31 = sadd.s32 1, %s24
      %p32 = scmp.ge.s32.totalorder %s31, 1
      %s33 = scalar_select %p32, 0, %s31
      %s34 = sadd.s32 1, %s23
      %s35 = scalar_select %p32, %s34, %s23
      %p36 = scmp.ge.s32.totalorder %s35, 3
      %s37 = scalar_select %p36, 0, %s35
      %s38 = sadd.s32 1, %s22
      %s39 = scalar_select %p36, %s38, %s22
      %p40 = scmp.ge.s32.totalorder %s39, 1
      %s41 = scalar_select %p40, 0, %s39
      %s42 = ssub.s32 %s23, %s37
      %s43 = ssub.s32 %s22, %s41
      %s44 = sor.u32 %s42, %s43
      %s45 = ssub.s32 %s24, %s33
      %s46 = sor.u32 %s44, %s45
      %p47 = scmp.eq.s32.totalorder %s46, 0
      %s49 = sadd.s32 %s48, 1
      %s50 = scalar_select %p47, %s48, %s49
      %p53 = pneg %p47
      %p54 = scmp.eq.s32.totalorder %s15, 2
      %p55 = por %p53, %p54
      %p56 = scmp.ne.s32.totalorder %s48, %s51
      %p57 = scmp.eq.s32.totalorder %s15, 0
      %p58 = por %p56, %p57
      %p59 = scmp.ne.s32.totalorder %s48, %s51
      %p60 = scmp.eq.s32.totalorder %s20, 2
      %p61 = por %p59, %p60
      %p62 = scmp.ne.s32.totalorder %s51, %s52
      %p63 = scmp.eq.s32.totalorder %s20, 0
      %p64 = por %p62, %p63
      %p65 = scmp.ne.s32.totalorder %s51, %s52
      %p66 = scmp.eq.s32.totalorder %s21, 2
      %p67 = por %p65, %p66
      %p69 = scmp.ne.s32.totalorder %s52, %s68
      %p70 = scmp.eq.s32.totalorder %s21, 0
      %p71 = por %p69, %p70
      %s72 = ssub.s32 %s24, %s33
      %p73 = scmp.eq.s32.totalorder %s72, 0
      %s75 = sadd.s32 %s74, 1
      %s76 = scalar_select %p73, %s74, %s75
      %p79 = pneg %p73
      %p80 = scmp.eq.s32.totalorder %s15, 2
      %p81 = por %p79, %p80
      %p82 = scmp.ne.s32.totalorder %s74, %s77
      %p83 = scmp.eq.s32.totalorder %s15, 0
      %p84 = por %p82, %p83
      %p85 = scmp.ne.s32.totalorder %s74, %s77
      %p86 = scmp.eq.s32.totalorder %s20, 2
      %p87 = por %p85, %p86
      %p88 = scmp.ne.s32.totalorder %s77, %s78
      %p89 = scmp.eq.s32.totalorder %s20, 0
      %p90 = por %p88, %p89
      %p91 = scmp.ne.s32.totalorder %s77, %s78
      %p92 = scmp.eq.s32.totalorder %s21, 2
      %p93 = por %p91, %p92
      %p95 = scmp.ne.s32.totalorder %s78, %s94
      %p96 = scmp.eq.s32.totalorder %s21, 0
      %p97 = por %p95, %p96
      %s98 = ssub.s32 %s23, %s37
      %p99 = scmp.eq.s32.totalorder %s98, 0
      %s101 = sadd.s32 %s100, 1
      %s102 = scalar_select %p99, %s100, %s101
      %p105 = pneg %p99
      %p106 = scmp.eq.s32.totalorder %s15, 2
      %p107 = por %p105, %p106
      %p108 = scmp.ne.s32.totalorder %s100, %s103
      %p109 = scmp.eq.s32.totalorder %s15, 0
      %p110 = por %p108, %p109
      %p111 = scmp.ne.s32.totalorder %s100, %s103
      %p112 = scmp.eq.s32.totalorder %s20, 2
      %p113 = por %p111, %p112
      %p114 = scmp.ne.s32.totalorder %s103, %s104
      %p115 = scmp.eq.s32.totalorder %s20, 0
      %p116 = por %p114, %p115
      %p117 = scmp.ne.s32.totalorder %s103, %s104
      %p118 = scmp.eq.s32.totalorder %s21, 2
      %p119 = por %p117, %p118
      %p121 = scmp.ne.s32.totalorder %s104, %s120
      %p122 = scmp.eq.s32.totalorder %s21, 0
      %p123 = por %p121, %p122
      %s125 = sadd.s32 %s124, 1
      %p128 = scmp.eq.s32.totalorder %s15, 2
      %p129 = scmp.ne.s32.totalorder %s124, %s126
      %p130 = scmp.eq.s32.totalorder %s15, 0
      %p131 = por %p129, %p130
      %p132 = scmp.ne.s32.totalorder %s124, %s126
      %p133 = scmp.eq.s32.totalorder %s20, 2
      %p134 = por %p132, %p133
      %p135 = scmp.ne.s32.totalorder %s126, %s127
      %p136 = scmp.eq.s32.totalorder %s20, 0
      %p137 = por %p135, %p136
      %p138 = scmp.ne.s32.totalorder %s126, %s127
      %p139 = scmp.eq.s32.totalorder %s21, 2
      %p140 = por %p138, %p139
      %p142 = scmp.ne.s32.totalorder %s127, %s141
      %p143 = scmp.eq.s32.totalorder %s21, 0
      %p144 = por %p142, %p143
      %s145 = ssub.s32 %s22, %s41
      %p146 = scmp.eq.s32.totalorder %s145, 0
      %s148 = sadd.s32 %s147, 1
      %s149 = scalar_select %p146, %s147, %s148
      %p152 = pneg %p146
      %p153 = scmp.eq.s32.totalorder %s15, 2
      %p154 = por %p152, %p153
      %p155 = scmp.ne.s32.totalorder %s147, %s150
      %p156 = scmp.eq.s32.totalorder %s15, 0
      %p157 = por %p155, %p156
      %p158 = scmp.ne.s32.totalorder %s147, %s150
      %p159 = scmp.eq.s32.totalorder %s20, 2
      %p160 = por %p158, %p159
      %p161 = scmp.ne.s32.totalorder %s150, %s151
      %p162 = scmp.eq.s32.totalorder %s20, 0
      %p163 = por %p161, %p162
      %p164 = scmp.ne.s32.totalorder %s150, %s151
      %p165 = scmp.eq.s32.totalorder %s21, 2
      %p166 = por %p164, %p165
      %p168 = scmp.ne.s32.totalorder %s151, %s167
      %p169 = scmp.eq.s32.totalorder %s21, 0
      %p170 = por %p168, %p169
      %p171 = scmp.le.s32.totalorder 1, %s15
      %p172 = scmp.lt.s32.totalorder %s15, 4
      %p173 = pnand %p171, %p172
      %p174 = pneg %p173
      // Predicated region
      $region9: #{tpu_custom_call.1} parent=5 // pred_check
        _
      $region10: #{tpu_custom_call.1} parent=5 // pred_check_branch
        %176 = sbr.rel (%p173) target = $region12
      $region11: #{tpu_custom_call.1} parent=5 // pred_region
        %s177 = ssub.s32 %s15, 1
        // Predicated region
        $region13: #{tpu_custom_call.1} parent=11 // pred_check
          %p178 = pneg %p90
        $region14: #{tpu_custom_call.1} parent=11 // pred_check_branch
          %180 = sbr.rel (%p178) target = $region16
        $region15: #{tpu_custom_call.1} parent=11 // pred_region
          %s181 = smul.u32 16, %s27
          %s183 = ssub.s32 1024, 1024
          %184 = vsyncadd [#allocation7], %s183
          %s185 = smul.addr %s181, 64
          %s186 = scalar_lea.hbm %s1, %s185
          %s187 = sshll.u32 [#allocation6], 4
          %s188 = int_to_ptr.vmem [resolvable:$true] %s187
          %193 = dma.hbm_to_vmem [thread:$0]  %s186, 1024, %s188, [#allocation7], 64, 64, 4
        $region16: #{tpu_custom_call.1} parent=11 // pred_fallthru
          _
        // Predicated region
        $region17: #{tpu_custom_call.1} parent=11 // pred_check
          %p194 = pneg %p137
        $region18: #{tpu_custom_call.1} parent=11 // pred_check_branch
          %196 = sbr.rel (%p194) target = $region20
        $region19: #{tpu_custom_call.1} parent=11 // pred_region
          _
        $region20: #{tpu_custom_call.1} parent=11 // pred_fallthru
          _
      $region12: #{tpu_custom_call.1} parent=5 // pred_fallthru
        _
      %p197 = scmp.lt.s32.totalorder %s15, 3
      // Predicated region
      $region21: #{tpu_custom_call.1} parent=5 // pred_check
        %p198 = pneg %p197
      $region22: #{tpu_custom_call.1} parent=5 // pred_check_branch
        %200 = sbr.rel (%p198) target = $region24
      $region23: #{tpu_custom_call.1} parent=5 // pred_region
        // Predicated region
        $region25: #{tpu_custom_call.1} parent=23 // pred_check
          %p201 = pneg %p58
        $region26: #{tpu_custom_call.1} parent=23 // pred_check_branch
          %203 = sbr.rel (%p201) target = $region28
        $region27: #{tpu_custom_call.1} parent=23 // pred_region
          %s204 = sand.u32 %s15, 1
          %s205 = scalar_lea.sflag [#allocation4], %s204
          %s206 = sand.u32 %s48, 1
          %s207 = smul.addr %s206, 8
          %s208 = scalar_lea.vmem [#allocation3], %s207
          %s209 = smul.u32 2, %s22
          %s211 = ssub.s32 128, 128
          %212 = vsyncadd %s205, %s211
          %s213 = sadd.s32 %s24, %s209
          %s214 = smul.addr %s23, 2
          %s215 = sadd.s32 %s213, %s214
          %s216 = smul.addr %s215, 64
          %s217 = scalar_lea.hbm %s0, %s216
          %s218 = sshll.u32 %s208, 4
          %s219 = int_to_ptr.vmem [resolvable:$true] %s218
          %224 = dma.hbm_to_vmem [thread:$0]  %s217, 128, %s219, %s205, 64, 64, 4
        $region28: #{tpu_custom_call.1} parent=23 // pred_fallthru
          _
        // Predicated region
        $region29: #{tpu_custom_call.1} parent=23 // pred_check
          %p225 = pneg %p110
        $region30: #{tpu_custom_call.1} parent=23 // pred_check_branch
          %227 = sbr.rel (%p225) target = $region32
        $region31: #{tpu_custom_call.1} parent=23 // pred_region
          %s228 = sand.u32 %s15, 1
          %s229 = scalar_lea.sflag [#allocation4], %s228
          %s230 = sand.u32 %s100, 1
          %s231 = smul.addr %s230, 64
          %s232 = scalar_lea.vmem [#allocation8], %s231
          %s234 = ssub.s32 1024, 1024
          %235 = vsyncadd %s229, %s234
          %s236 = smul.addr %s23, 16
          %s237 = smul.addr %s236, 64
          %s238 = scalar_lea.hbm %s2, %s237
          %s239 = sshll.u32 %s232, 4
          %s240 = int_to_ptr.vmem [resolvable:$true] %s239
          %245 = dma.hbm_to_vmem [thread:$0]  %s238, 1024, %s240, %s229, 64, 64, 4
        $region32: #{tpu_custom_call.1} parent=23 // pred_fallthru
          _
      $region24: #{tpu_custom_call.1} parent=5 // pred_fallthru
        _
      %p246 = scmp.le.s32.totalorder 1, %s15
      %p247 = scmp.lt.s32.totalorder %s15, 4
      %p248 = pnand %p246, %p247
      %p249 = pneg %p248
      // Predicated region
      $region33: #{tpu_custom_call.1} parent=5 // pred_check
        _
      $region34: #{tpu_custom_call.1} parent=5 // pred_check_branch
        %251 = sbr.rel (%p248) target = $region36
      $region35: #{tpu_custom_call.1} parent=5 // pred_region
        %s252 = ssub.s32 %s15, 1
        %s253 = sand.u32 %s20, 1
        %s254 = scalar_lea.sflag [#allocation4], %s253
        %s255 = sand.u32 %s51, 1
        %s256 = smul.addr %s255, 8
        %s257 = scalar_lea.vmem [#allocation3], %s256
        // Predicated region
        $region37: #{tpu_custom_call.1} parent=35 // pred_check
          %p258 = pneg %p64
        $region38: #{tpu_custom_call.1} parent=35 // pred_check_branch
          %260 = sbr.rel (%p258) target = $region40
        $region39: #{tpu_custom_call.1} parent=35 // pred_region
          %261 = dma.done %s254, 128
        $region40: #{tpu_custom_call.1} parent=35 // pred_fallthru
          _
        // Predicated region
        $region41: #{tpu_custom_call.1} parent=35 // pred_check
          %p262 = pneg %p90
        $region42: #{tpu_custom_call.1} parent=35 // pred_check_branch
          %264 = sbr.rel (%p262) target = $region44
        $region43: #{tpu_custom_call.1} parent=35 // pred_region
          %265 = dma.done [#allocation7], 1024
        $region44: #{tpu_custom_call.1} parent=35 // pred_fallthru
          _
        %s266 = sand.u32 %s20, 1
        %s267 = scalar_lea.sflag [#allocation4], %s266
        %s268 = sand.u32 %s103, 1
        %s269 = smul.addr %s268, 64
        %s270 = scalar_lea.vmem [#allocation8], %s269
        // Predicated region
        $region45: #{tpu_custom_call.1} parent=35 // pred_check
          %p271 = pneg %p116
        $region46: #{tpu_custom_call.1} parent=35 // pred_check_branch
          %273 = sbr.rel (%p271) target = $region48
        $region47: #{tpu_custom_call.1} parent=35 // pred_region
          %274 = dma.done %s267, 1024
        $region48: #{tpu_custom_call.1} parent=35 // pred_fallthru
          _
        %s275 = sand.u32 %s20, 1
        %s276 = scalar_lea.sflag [#allocation4], %s275
        %s277 = sand.u32 %s51, 1
        %s278 = smul.addr %s277, 8
        %s279 = scalar_lea.vmem [#allocation3], %s278
        %p280 = pneg %p64
        %p281 = pneg %p61
        %p282 = pneg %p90
        %p283 = pneg %p87
        %s284 = sand.u32 %s20, 1
        %s285 = scalar_lea.sflag [#allocation4], %s284
        %s286 = sand.u32 %s103, 1
        %s287 = smul.addr %s286, 64
        %s288 = scalar_lea.vmem [#allocation8], %s287
        %p289 = pneg %p116
        %p290 = pneg %p113
        %p291 = pneg %p137
        %p292 = pneg %p134
        %p293 = pneg %p163
        %p294 = pneg %p160
        %s295 = smul.u32 2, %s25
        %s296 = smul.u32 16, %s27
        %s297 = smul.u32 2, %s25
        %p299 = scmp.eq.s32.totalorder %s26, 0
        %p300 = scmp.eq.s32.totalorder %s27, 0
        %p301 = pnand %p299, %p300
        %p302 = pneg %p301
        // Predicated region
        $region49: #{tpu_custom_call.1} parent=35 // pred_check
          _
        $region50: #{tpu_custom_call.1} parent=35 // pred_check_branch
          %304 = sbr.rel (%p301) target = $region52
        $region51: #{tpu_custom_call.1} parent=35 // pred_region
          %305 = vst [vmem:[#allocation9] sm:$0xff] 0.0
          %306 = vst [vmem:[#allocation9 + $0x8] sm:$0xff] 0.0
        $region52: #{tpu_custom_call.1} parent=35 // pred_fallthru
          _
        // Predicated region
        $region53: #{tpu_custom_call.1} parent=35 // pred_check
          %p307 = pneg %p300
        $region54: #{tpu_custom_call.1} parent=35 // pred_check_branch
          %309 = sbr.rel (%p307) target = $region56
        $region55: #{tpu_custom_call.1} parent=35 // pred_region
          %310 = vst [vmem:[#allocation2] sm:$0xff] 0.0
          %311 = vst [vmem:[#allocation2 + $0x8] sm:$0xff] 0.0
        $region56: #{tpu_custom_call.1} parent=35 // pred_fallthru
          _
        %v312 = vld [vmem:[#allocation2] sm:$0xff]
        %v313 = vld [vmem:[#allocation2 + $0x8] sm:$0xff]
        %v314 = vld [vmem:[%s257] sm:$0xf]
        %v315 = vld [vmem:[%s257 + $0x4] sm:$0xf]
        %v316 = vld [vmem:[#allocation6] sm:$0xf]
        %v317 = vld [vmem:[#allocation6 + $0x4] sm:$0xf]
        %v318 = vld [vmem:[#allocation6 + $0x8] sm:$0xf]
        %v319 = vld [vmem:[#allocation6 + $0xc] sm:$0xf]
        %v320 = vld [vmem:[#allocation6 + $0x10] sm:$0xf]
        %v321 = vld [vmem:[#allocation6 + $0x14] sm:$0xf]
        %v322 = vld [vmem:[#allocation6 + $0x18] sm:$0xf]
        %v323 = vld [vmem:[#allocation6 + $0x1c] sm:$0xf]
        %v324 = vld [vmem:[#allocation6 + $0x20] sm:$0xf]
        %v325 = vld [vmem:[#allocation6 + $0x24] sm:$0xf]
        %v326 = vld [vmem:[#allocation6 + $0x28] sm:$0xf]
        %v327 = vld [vmem:[#allocation6 + $0x2c] sm:$0xf]
        %v328 = vld [vmem:[#allocation6 + $0x30] sm:$0xf]
        %v329 = vld [vmem:[#allocation6 + $0x34] sm:$0xf]
        %v330 = vld [vmem:[#allocation6 + $0x38] sm:$0xf]
        %v331 = vld [vmem:[#allocation6 + $0x3c] sm:$0xf]
        %v334 = vunpack.c.l.b16 %v314
        %v335 = vunpack.c.l.b16 %v315
        %v336 = vpack.c.b16 %v335, %v334
        %v354 = vunpack.c.l.b16 %v316
        %v355 = vunpack.c.l.b16 %v317
        %v356 = vunpack.c.l.b16 %v318
        %v357 = vunpack.c.l.b16 %v319
        %v358 = vunpack.c.l.b16 %v320
        %v359 = vunpack.c.l.b16 %v321
        %v360 = vunpack.c.l.b16 %v322
        %v361 = vunpack.c.l.b16 %v323
        %v362 = vunpack.c.l.b16 %v324
        %v363 = vunpack.c.l.b16 %v325
        %v364 = vunpack.c.l.b16 %v326
        %v365 = vunpack.c.l.b16 %v327
        %v366 = vunpack.c.l.b16 %v328
        %v367 = vunpack.c.l.b16 %v329
        %v368 = vunpack.c.l.b16 %v330
        %v369 = vunpack.c.l.b16 %v331
        %v370 = vpack.c.b16 %v355, %v354
        %v371 = vpack.c.b16 %v357, %v356
        %v372 = vpack.c.b16 %v359, %v358
        %v373 = vpack.c.b16 %v361, %v360
        %v374 = vpack.c.b16 %v363, %v362
        %v375 = vpack.c.b16 %v365, %v364
        %v376 = vpack.c.b16 %v367, %v366
        %v377 = vpack.c.b16 %v369, %v368
        %386 = vmatprep.subr.bf16.mxu0 0
        %387 = vmatpush1.bf16.msra.mxu0 %v370
        %388 = vmatprep.subr.bf16.mxu0 0
        %389 = vmatpush1.bf16.msra.mxu0 %v371
        %390 = vmatprep.subr.bf16.mxu0 0
        %391 = vmatpush1.bf16.msra.mxu0 %v372
        %392 = vmatprep.subr.bf16.mxu0 0
        %393 = vmatpush1.bf16.msra.mxu0 %v373
        %394 = vmatprep.subr.bf16.mxu0 0
        %395 = vmatpush1.bf16.msra.mxu0 %v374
        %396 = vmatprep.subr.bf16.mxu0 0
        %397 = vmatpush1.bf16.msra.mxu0 %v375
        %398 = vmatprep.subr.bf16.mxu0 0
        %399 = vmatpush1.bf16.msra.mxu0 %v376
        %400 = vmatprep.subr.bf16.mxu0 0
        %401 = vmatpush1.bf16.msra.mxu0 %v377
        %402 = vmatprep.subr.bf16.mxu0 0
        %403 = vmatpush1.bf16.msra.mxu0 0
        %404 = vmatprep.subr.bf16.mxu0 0
        %405 = vmatpush1.bf16.msra.mxu0 0
        %406 = vmatprep.subr.bf16.mxu0 0
        %407 = vmatpush1.bf16.msra.mxu0 0
        %408 = vmatprep.subr.bf16.mxu0 0
        %409 = vmatpush1.bf16.msra.mxu0 0
        %410 = vmatprep.subr.bf16.mxu0 0
        %411 = vmatpush1.bf16.msra.mxu0 0
        %412 = vmatprep.subr.bf16.mxu0 0
        %413 = vmatpush1.bf16.msra.mxu0 0
        %414 = vmatprep.subr.bf16.mxu0 0
        %415 = vmatpush1.bf16.msra.mxu0 0
        %416 = vmatprep.subr.bf16.mxu0 0
        %417 = vmatpush1.bf16.msra.mxu0 0
        %418 = vmatprep.mubr.bf16.mxu0 0
        %419 = vmatmul.mubr.bf16.gmra.mrb[0].mxu0 %v336
        %v420 = vpop.f32.mrb[0].mxu0
        %v421 = vadd.f32 0.0, %v420
        %v422 = vpop.f32.mrb[0].mxu0
        %v423 = vpop.f32.mrb[0].mxu0
        %v424 = vadd.f32 0.0, %v423
        %v425 = vpop.f32.mrb[0].mxu0
        %426 = vdwg.mxu0
        %v427 = vadd.f32 %v312, %v421
        %v428 = vadd.f32 %v313, %v424
        %429 = vst [vmem:[#allocation2] sm:$0xff] %v427
        %430 = vst [vmem:[#allocation2 + $0x8] sm:$0xff] %v428
        // Predicated region
        $region57: #{tpu_custom_call.1} parent=35 // pred_check
          %p431 = pneg %p300
        $region58: #{tpu_custom_call.1} parent=35 // pred_check_branch
          %433 = sbr.rel (%p431) target = $region60
        $region59: #{tpu_custom_call.1} parent=35 // pred_region
          %v434 = vld [vmem:[#allocation9] sm:$0xff]
          %v435 = vld [vmem:[#allocation9 + $0x8] sm:$0xff]
          %v436 = vld [vmem:[#allocation2] sm:$0xff]
          %v437 = vld [vmem:[#allocation2 + $0x8] sm:$0xff]
          %v438 = vpack.c.bf16 %v437, %v436
          %v439 = vld [vmem:[%s270] sm:$0xf]
          %v440 = vld [vmem:[%s270 + $0x4] sm:$0xf]
          %v441 = vld [vmem:[%s270 + $0x8] sm:$0xf]
          %v442 = vld [vmem:[%s270 + $0xc] sm:$0xf]
          %v443 = vld [vmem:[%s270 + $0x10] sm:$0xf]
          %v444 = vld [vmem:[%s270 + $0x14] sm:$0xf]
          %v445 = vld [vmem:[%s270 + $0x18] sm:$0xf]
          %v446 = vld [vmem:[%s270 + $0x1c] sm:$0xf]
          %v447 = vld [vmem:[%s270 + $0x20] sm:$0xf]
          %v448 = vld [vmem:[%s270 + $0x24] sm:$0xf]
          %v449 = vld [vmem:[%s270 + $0x28] sm:$0xf]
          %v450 = vld [vmem:[%s270 + $0x2c] sm:$0xf]
          %v451 = vld [vmem:[%s270 + $0x30] sm:$0xf]
          %v452 = vld [vmem:[%s270 + $0x34] sm:$0xf]
          %v453 = vld [vmem:[%s270 + $0x38] sm:$0xf]
          %v454 = vld [vmem:[%s270 + $0x3c] sm:$0xf]
          %v471 = vunpack.c.l.b16 %v439
          %v472 = vunpack.c.l.b16 %v440
          %v473 = vunpack.c.l.b16 %v441
          %v474 = vunpack.c.l.b16 %v442
          %v475 = vunpack.c.l.b16 %v443
          %v476 = vunpack.c.l.b16 %v444
          %v477 = vunpack.c.l.b16 %v445
          %v478 = vunpack.c.l.b16 %v446
          %v479 = vunpack.c.l.b16 %v447
          %v480 = vunpack.c.l.b16 %v448
          %v481 = vunpack.c.l.b16 %v449
          %v482 = vunpack.c.l.b16 %v450
          %v483 = vunpack.c.l.b16 %v451
          %v484 = vunpack.c.l.b16 %v452
          %v485 = vunpack.c.l.b16 %v453
          %v486 = vunpack.c.l.b16 %v454
          %v487 = vpack.c.b16 %v472, %v471
          %v488 = vpack.c.b16 %v474, %v473
          %v489 = vpack.c.b16 %v476, %v475
          %v490 = vpack.c.b16 %v478, %v477
          %v491 = vpack.c.b16 %v480, %v479
          %v492 = vpack.c.b16 %v482, %v481
          %v493 = vpack.c.b16 %v484, %v483
          %v494 = vpack.c.b16 %v486, %v485
          %503 = vmatprep.subr.bf16.mxu0 0
          %504 = vmatpush1.bf16.msra.mxu0 %v487
          %505 = vmatprep.subr.bf16.mxu0 0
          %506 = vmatpush1.bf16.msra.mxu0 %v488
          %507 = vmatprep.subr.bf16.mxu0 0
          %508 = vmatpush1.bf16.msra.mxu0 %v489
          %509 = vmatprep.subr.bf16.mxu0 0
          %510 = vmatpush1.bf16.msra.mxu0 %v490
          %511 = vmatprep.subr.bf16.mxu0 0
          %512 = vmatpush1.bf16.msra.mxu0 %v491
          %513 = vmatprep.subr.bf16.mxu0 0
          %514 = vmatpush1.bf16.msra.mxu0 %v492
          %515 = vmatprep.subr.bf16.mxu0 0
          %516 = vmatpush1.bf16.msra.mxu0 %v493
          %517 = vmatprep.subr.bf16.mxu0 0
          %518 = vmatpush1.bf16.msra.mxu0 %v494
          %519 = vmatprep.subr.bf16.mxu0 0
          %520 = vmatpush1.bf16.msra.mxu0 0
          %521 = vmatprep.subr.bf16.mxu0 0
          %522 = vmatpush1.bf16.msra.mxu0 0
          %523 = vmatprep.subr.bf16.mxu0 0
          %524 = vmatpush1.bf16.msra.mxu0 0
          %525 = vmatprep.subr.bf16.mxu0 0
          %526 = vmatpush1.bf16.msra.mxu0 0
          %527 = vmatprep.subr.bf16.mxu0 0
          %528 = vmatpush1.bf16.msra.mxu0 0
          %529 = vmatprep.subr.bf16.mxu0 0
          %530 = vmatpush1.bf16.msra.mxu0 0
          %531 = vmatprep.subr.bf16.mxu0 0
          %532 = vmatpush1.bf16.msra.mxu0 0
          %533 = vmatprep.subr.bf16.mxu0 0
          %534 = vmatpush1.bf16.msra.mxu0 0
          %535 = vmatprep.mubr.bf16.mxu0 0
          %536 = vmatmul.mubr.bf16.gmra.mrb[0].mxu0 %v438
          %v537 = vpop.f32.mrb[0].mxu0
          %v538 = vadd.f32 0.0, %v537
          %v539 = vpop.f32.mrb[0].mxu0
          %v540 = vpop.f32.mrb[0].mxu0
          %v541 = vadd.f32 0.0, %v540
          %v542 = vpop.f32.mrb[0].mxu0
          %543 = vdwg.mxu0
          %v544 = vadd.f32 %v434, %v538
          %v545 = vadd.f32 %v435, %v541
          %546 = vst [vmem:[#allocation9] sm:$0xff] %v544
          %547 = vst [vmem:[#allocation9 + $0x8] sm:$0xff] %v545
        $region60: #{tpu_custom_call.1} parent=35 // pred_fallthru
          _
        %p548 = scmp.eq.s32.totalorder %s26, 2
        %p549 = pnand %p548, %p300
        %p550 = pneg %p549
        // Predicated region
        $region61: #{tpu_custom_call.1} parent=35 // pred_check
          _
        $region62: #{tpu_custom_call.1} parent=35 // pred_check_branch
          %552 = sbr.rel (%p549) target = $region64
        $region63: #{tpu_custom_call.1} parent=35 // pred_region
          %v553 = vld [vmem:[#allocation9] sm:$0xff]
          %v554 = vld [vmem:[#allocation9 + $0x8] sm:$0xff]
          %v555 = vld [vmem:[%s3] sm:$0x1]
          %v557 = vlaneseq
          %v558 = vshrl.u32 %v557, 7
          %v559 = vsub.s32 0, %v558
          %v560 = vrot.slane %v555, %v559
          %v562 = vadd.f32 %v553, %v560
          %v563 = vadd.f32 %v554, %v560
          %v564 = vmax.f32 %v562, 0.0
          %v565 = vmax.f32 %v563, 0.0
          %566 = vst [vmem:[#allocation9] sm:$0xff] %v564
          %567 = vst [vmem:[#allocation9 + $0x8] sm:$0xff] %v565
        $region64: #{tpu_custom_call.1} parent=35 // pred_fallthru
          _
        // Predicated region
        $region65: #{tpu_custom_call.1} parent=35 // pred_check
          %p568 = pneg %p160
        $region66: #{tpu_custom_call.1} parent=35 // pred_check_branch
          %570 = sbr.rel (%p568) target = $region68
        $region67: #{tpu_custom_call.1} parent=35 // pred_region
          %s571 = smul.u32 2, %s25
          %s573 = ssub.s32 256, 256
          %574 = vsyncadd [#allocation5], %s573
          %s575 = smul.addr %s571, 128
          %s576 = scalar_lea.hbm %s4, %s575
          %s577 = sshll.u32 [#allocation9], 4
          %s578 = int_to_ptr.vmem [resolvable:$true] %s577
          %583 = dma.vmem_to_hbm [thread:$0]  %s578, 256, %s576, [#allocation5], 128, 128, 8
        $region68: #{tpu_custom_call.1} parent=35 // pred_fallthru
          _
        // Predicated region
        $region69: #{tpu_custom_call.1} parent=35 // pred_check
          %p584 = pneg %p160
        $region70: #{tpu_custom_call.1} parent=35 // pred_check_branch
          %586 = sbr.rel (%p584) target = $region72
        $region71: #{tpu_custom_call.1} parent=35 // pred_region
          %587 = dma.done [#allocation5], 256
        $region72: #{tpu_custom_call.1} parent=35 // pred_fallthru
          _
      $region36: #{tpu_custom_call.1} parent=5 // pred_fallthru
        _
      %p588 = scmp.le.s32.totalorder 2, %s15
      // Predicated region
      $region73: #{tpu_custom_call.1} parent=5 // pred_check
        %p589 = pneg %p588
      $region74: #{tpu_custom_call.1} parent=5 // pred_check_branch
        %591 = sbr.rel (%p589) target = $region76
      $region75: #{tpu_custom_call.1} parent=5 // pred_region
        %s592 = ssub.s32 %s15, 2
      $region76: #{tpu_custom_call.1} parent=5 // pred_fallthru
        _
    $region6: #{tpu_custom_call.1} parent=1 // loop_footer
      %s19 = sadd.s32 1, %s15
    $region7: #{tpu_custom_call.1} parent=1 // loop_footer_branch
      %14 = sbr.rel target = $region3
    $region8: #{tpu_custom_call.1} parent=1 // loop_exit
      _
    %593 = vsyncpa [#allocation4], 1
    %s594 = scalar_lea.sflag [#allocation4], 1
    %595 = vsyncpa %s594, 1
    %596 = vsyncpa [#allocation7], 1
    %597 = vsyncpa [#allocation5], 1
    %s598 = scalar_lea.sflag [#allocation5], 1
    %599 = vsyncpa %s598, 1

</llo_original>
